<compile_context>
chip_gen: v7x
topology: tpu7x:2x2x1
jax: 0.10.0
libtpu: 0.0.40
codegen_flags: <defaults>
</compile_context>

<pallas_src>
import functools

import numpy as np
import jax
import jax.numpy as jnp
from jax import lax
from jax.experimental import pallas as pl
from jax.experimental.pallas import tpu as pltpu


def _conv_block_kernel(x_ref, xx_ref, w_ref, b_ref, o_ref, col_ref, *,
                       Cin_pad, K, H, W, pad, HWp, apply_relu):
    """One image per grid step (fused conv + bias [+ ReLU]).

    x_ref:   (1, Cin_pad, HWp)    bf16  input image, NCHW w/ flattened spatial in lanes
    xx_ref:  (1, HWp)             i32   column index per lane (sentinel in pad lanes)
    w_ref:   (Cout, K*K*Cin_pad)  bf16  repacked conv weight
    b_ref:   (Cout, 1)            f32   bias
    o_ref:   (1, Cout, HWp)       f32   output image, NCHW w/ flattened spatial
    col_ref: (K*K*Cin_pad, HWp)   bf16  VMEM scratch: im2col RHS
    """
    xin = x_ref[0].astype(jnp.float32)                      # (Cin_pad, HWp)
    xx = xx_ref[...]                                        # (1, HWp) int32
    p = lax.broadcasted_iota(jnp.int32, (1, HWp), 1)        # flat pixel index

    # Build the im2col RHS: per tap one lane-roll (XLU), 4 compares (VPU) for
    # the in-kernel 0/1 boundary mask, one masked multiply, one aligned
    # full-tile bf16 store.  No mask tensor is read from HBM.
    for kh in range(K):
        for kw in range(K):
            j = kh * K + kw
            dy, dx = kh - pad, kw - pad
            s = dy * W + dx                                  # flat source offset
            shifted = xin if s == 0 else pltpu.roll(xin, shift=(-s) % HWp, axis=1)
            # Row bound is a pure range compare on the flat index (exact since
            # the bounds are multiples of W); column bound uses the precomputed
            # x coordinate (sentinel in lane-padding region -> mask 0 there).
            m = ((p >= -dy * W) & (p < (H - dy) * W) &
                 (xx >= -dx) & (xx < W - dx)).astype(jnp.float32)
            col_ref[j * Cin_pad:(j + 1) * Cin_pad, :] = (shifted * m).astype(jnp.bfloat16)

    # Single fused MXU matmul per image: (Cout, K*K*Cin_pad) x (K*K*Cin_pad, HWp)
    acc = jnp.dot(w_ref[...], col_ref[...], preferred_element_type=jnp.float32)
    acc = acc + b_ref[...]                                   # lane-broadcast bias
    if apply_relu:
        acc = jnp.maximum(acc, 0.0)
    o_ref[0] = acc.astype(o_ref.dtype)                       # lane-dense store


def conv_block_forward(x, weight, bias, padding, relu=True):
    """Pallas ConvBlock.forward: Conv2d(stride=1, padding=padding) [+ ReLU].

    x:      (N, Cin, H, W)    f32 (NCHW, as in PyTorch)
    weight: (Cout, Cin, K, K) f32 (PyTorch Conv2d layout)
    bias:   (Cout,)           f32
    returns (N, Cout, Hout, Wout) f32
    """
    N, Cin, H, W = x.shape
    Cout, Cin_w, K, K_w = weight.shape
    assert Cin_w == Cin and K_w == K
    Hout = H + 2 * padding - K + 1
    Wout = W + 2 * padding - K + 1

    # Padding is handled by in-kernel boundary masks whenever the output grid
    # fits inside the input grid (2*padding <= K-1, the SRCNN same-conv case).
    # Only "excess" padding beyond that needs a small explicit spatial pad.
    excess = max(0, padding - (K - 1) // 2)
    if excess > 0:
        x = jnp.pad(x, ((0, 0), (0, 0), (excess, excess), (excess, excess)))
    pad_k = padding - excess
    Hk, Wk = H + 2 * excess, W + 2 * excess
    HW = Hk * Wk
    HWp = ((HW + 127) // 128) * 128            # lane-pad spatial to multiple of 128
    Cin_pad = ((Cin + 15) // 16) * 16          # 16-row tap blocks -> aligned bf16 stores

    # bf16 input, NCHW with flattened spatial (pure reshape, no transpose);
    # zero-pad channels and lanes.
    x2 = x.reshape(N, Cin, HW).astype(jnp.bfloat16)
    x2 = jnp.pad(x2, ((0, 0), (0, Cin_pad - Cin), (0, HWp - HW)))

    # Column index of each lane; always-fail sentinel in the lane-padding region
    # so the in-kernel masks are identically zero there.
    pnp = np.arange(HWp, dtype=np.int64)
    xs = (pnp % Wk).astype(np.int32)
    xs[HW:] = -(Wk + K)
    xx_row = jnp.asarray(xs.reshape(1, HWp))

    # Repack weight to (Cout, K*K*Cin_pad) in (kh, kw, ci) order, zero rows for
    # padded channels; bf16 MXU operands, f32 accumulation.
    w2 = jnp.transpose(weight, (0, 2, 3, 1))                 # (Cout, K, K, Cin)
    w2 = jnp.pad(w2, ((0, 0), (0, 0), (0, 0), (0, Cin_pad - Cin)))
    w2 = w2.reshape(Cout, K * K * Cin_pad).astype(jnp.bfloat16)
    b2 = bias.reshape(Cout, 1).astype(jnp.float32)

    kernel = functools.partial(
        _conv_block_kernel, Cin_pad=Cin_pad, K=K, H=Hk, W=Wk, pad=pad_k,
        HWp=HWp, apply_relu=relu)

    cost = pl.CostEstimate(
        flops=2 * N * Cout * K * K * Cin * Hk * Wk,
        transcendentals=0,
        bytes_accessed=int(x2.size * 2 + w2.size * 2 + xx_row.size * 4
                           + b2.size * 4 + N * Cout * HWp * 4))

    out = pl.pallas_call(
        kernel,
        out_shape=jax.ShapeDtypeStruct((N, Cout, HWp), jnp.float32),
        grid_spec=pltpu.PrefetchScalarGridSpec(
            num_scalar_prefetch=0,
            grid=(N,),                                       # one image per step
            in_specs=[
                pl.BlockSpec((1, Cin_pad, HWp), lambda n: (n, 0, 0)),
                pl.BlockSpec((1, HWp), lambda n: (0, 0)),
                pl.BlockSpec((Cout, K * K * Cin_pad), lambda n: (0, 0)),
                pl.BlockSpec((Cout, 1), lambda n: (0, 0)),
            ],
            out_specs=pl.BlockSpec((1, Cout, HWp), lambda n: (n, 0, 0)),
            scratch_shapes=[pltpu.VMEM((K * K * Cin_pad, HWp), jnp.bfloat16)],
        ),
        compiler_params=pltpu.CompilerParams(
            dimension_semantics=("parallel",)),              # v7x: split batch over TCs
        cost_estimate=cost,
    )(x2, xx_row, w2, b2)

    # Output is already NCHW-flattened; un-flatten and crop (crop also discards
    # the lane-padded columns, which hold only bias/ReLU(bias)).
    out = out[:, :, :HW].reshape(N, Cout, Hk, Wk)
    return out[:, :, :Hout, :Wout]


def _reference(x, weight, bias, padding, relu=True):
    # Pure-JAX reference (XLA conv, f32 accumulation) for correctness checking.
    out = lax.conv_general_dilated(
        x, weight,
        window_strides=(1, 1),
        padding=[(padding, padding), (padding, padding)],
        dimension_numbers=("NCHW", "OIHW", "NCHW"),
        precision=lax.Precision.HIGHEST,
    )
    out = out + bias.reshape(1, -1, 1, 1)
    if relu:
        out = jnp.maximum(out, 0.0)
    return out


if __name__ == "__main__":
    # ConvBlock(in_channel=4, out_channel=8, kernel_size=3, padding=1, relu=...)
    N, Cin, H, W = 2, 4, 16, 16
    Cout, K, pad = 8, 3, 1

    key = jax.random.PRNGKey(0)
    kx, kw, kb = jax.random.split(key, 3)

    x = jax.random.normal(kx, (N, Cin, H, W), dtype=jnp.float32)
    fan_in = Cin * K * K
    bound = 1.0 / (fan_in ** 0.5)
    weight = jax.random.uniform(kw, (Cout, Cin, K, K), dtype=jnp.float32,
                                minval=-bound, maxval=bound)
    bias = jax.random.uniform(kb, (Cout,), dtype=jnp.float32,
                              minval=-bound, maxval=bound)

    # The kernel feeds the MXU bf16 operands (with f32 accumulation), so compare
    # against a reference computed on the same bf16-rounded operands.
    x_bf = x.astype(jnp.bfloat16).astype(jnp.float32)
    w_bf = weight.astype(jnp.bfloat16).astype(jnp.float32)

    for relu in (True, False):
        out = conv_block_forward(x, weight, bias, padding=pad, relu=relu)
        out = jax.block_until_ready(out)
        ref = jax.block_until_ready(
            _reference(x_bf, w_bf, bias, padding=pad, relu=relu))
        assert out.shape == (N, Cout, H, W), out.shape
        err = jnp.max(jnp.abs(out - ref))
        assert jnp.allclose(out, ref, atol=1e-3, rtol=1e-3), \
            f"max abs err {err} (relu={relu})"

    print("KERNEL_OK")
</pallas_src>

<mosaic_0001>
module attributes {stable_mosaic.version = 11 : i64} {
  func.func @_conv_block_kernel(%arg0: i32, %arg1: memref<1x16x256xbf16, #tpu.memory_space<vmem>>, %arg2: memref<1x256xi32, #tpu.memory_space<vmem>>, %arg3: memref<8x144xbf16, #tpu.memory_space<vmem>>, %arg4: memref<8x1xf32, #tpu.memory_space<vmem>>, %arg5: memref<1x8x256xf32, #tpu.memory_space<vmem>>, %arg6: memref<144x256xbf16, #tpu.memory_space<vmem>>) attributes {dimension_semantics = [#tpu.dimension_semantics<parallel>], iteration_bounds = array<i64: 2>, scalar_prefetch = 0 : i64, scratch_operands = 1 : i64, tpu.core_type = #tpu.core_type<tc>, window_params = [{transform_indices = @transform_0, window_bounds = array<i64: 1, 16, 256>}, {pipeline_mode = #tpu.pipeline_mode<synchronous>, transform_indices = @transform_1, window_bounds = array<i64: 1, 256>}, {pipeline_mode = #tpu.pipeline_mode<synchronous>, transform_indices = @transform_2, window_bounds = array<i64: 8, 144>}, {pipeline_mode = #tpu.pipeline_mode<synchronous>, transform_indices = @transform_3, window_bounds = array<i64: 8, 1>}, {transform_indices = @transform_4, window_bounds = array<i64: 1, 8, 256>}]} {
    %c0 = arith.constant 0 : index
    %c0_0 = arith.constant 0 : index
    %c0_1 = arith.constant 0 : index
    %0 = vector.load %arg1[%c0, %c0_0, %c0_1] : memref<1x16x256xbf16, #tpu.memory_space<vmem>>, vector<1x16x256xbf16>
    %1 = vector.shape_cast %0 : vector<1x16x256xbf16> to vector<16x256xbf16>
    %2 = arith.extf %1 : vector<16x256xbf16> to vector<16x256xf32>
    %c0_2 = arith.constant 0 : index
    %c0_3 = arith.constant 0 : index
    %3 = vector.load %arg2[%c0_2, %c0_3] : memref<1x256xi32, #tpu.memory_space<vmem>>, vector<1x256xi32>
    %4 = tpu.iota {dimensions = array<i32: 1>} : vector<1x256xi32>
    %c17_i32 = arith.constant 17 : i32
    %5 = tpu.dynamic_rotate %2 by %c17_i32 dim 1 : vector<16x256xf32>, i32 -> vector<16x256xf32>
    %c16_i32 = arith.constant 16 : i32
    %6 = vector.broadcast %c16_i32 : i32 to vector<1x256xi32>
    %7 = arith.cmpi sge, %4, %6 : vector<1x256xi32>
    %c272_i32 = arith.constant 272 : i32
    %8 = vector.broadcast %c272_i32 : i32 to vector<1x256xi32>
    %9 = arith.cmpi slt, %4, %8 : vector<1x256xi32>
    %10 = arith.andi %7, %9 : vector<1x256xi1>
    %c1_i32 = arith.constant 1 : i32
    %11 = vector.broadcast %c1_i32 : i32 to vector<1x256xi32>
    %12 = arith.cmpi sge, %3, %11 : vector<1x256xi32>
    %13 = arith.andi %10, %12 : vector<1x256xi1>
    %c17_i32_4 = arith.constant 17 : i32
    %14 = vector.broadcast %c17_i32_4 : i32 to vector<1x256xi32>
    %15 = arith.cmpi slt, %3, %14 : vector<1x256xi32>
    %16 = arith.andi %13, %15 : vector<1x256xi1>
    %17 = arith.extui %16 : vector<1x256xi1> to vector<1x256xi32>
    %18 = arith.sitofp %17 : vector<1x256xi32> to vector<1x256xf32>
    %19 = vector.broadcast %18 : vector<1x256xf32> to vector<16x256xf32>
    %20 = arith.mulf %5, %19 : vector<16x256xf32>
    %21 = arith.truncf %20 : vector<16x256xf32> to vector<16x256xbf16>
    %c0_5 = arith.constant 0 : index
    %c0_6 = arith.constant 0 : index
    %22 = vector.load %arg6[%c0_5, %c0_6] : memref<144x256xbf16, #tpu.memory_space<vmem>>, vector<16x256xbf16>
    tpu.vector_store %arg6[%c0_5, %c0_6], %21 {strides = array<i32>} : memref<144x256xbf16, #tpu.memory_space<vmem>>, vector<16x256xbf16>,
    %c16_i32_7 = arith.constant 16 : i32
    %23 = tpu.dynamic_rotate %2 by %c16_i32_7 dim 1 : vector<16x256xf32>, i32 -> vector<16x256xf32>
    %c16_i32_8 = arith.constant 16 : i32
    %24 = vector.broadcast %c16_i32_8 : i32 to vector<1x256xi32>
    %25 = arith.cmpi sge, %4, %24 : vector<1x256xi32>
    %c272_i32_9 = arith.constant 272 : i32
    %26 = vector.broadcast %c272_i32_9 : i32 to vector<1x256xi32>
    %27 = arith.cmpi slt, %4, %26 : vector<1x256xi32>
    %28 = arith.andi %25, %27 : vector<1x256xi1>
    %c0_i32 = arith.constant 0 : i32
    %29 = vector.broadcast %c0_i32 : i32 to vector<1x256xi32>
    %30 = arith.cmpi sge, %3, %29 : vector<1x256xi32>
    %31 = arith.andi %28, %30 : vector<1x256xi1>
    %c16_i32_10 = arith.constant 16 : i32
    %32 = vector.broadcast %c16_i32_10 : i32 to vector<1x256xi32>
    %33 = arith.cmpi slt, %3, %32 : vector<1x256xi32>
    %34 = arith.andi %31, %33 : vector<1x256xi1>
    %35 = arith.extui %34 : vector<1x256xi1> to vector<1x256xi32>
    %36 = arith.sitofp %35 : vector<1x256xi32> to vector<1x256xf32>
    %37 = vector.broadcast %36 : vector<1x256xf32> to vector<16x256xf32>
    %38 = arith.mulf %23, %37 : vector<16x256xf32>
    %39 = arith.truncf %38 : vector<16x256xf32> to vector<16x256xbf16>
    %c16 = arith.constant 16 : index
    %c0_11 = arith.constant 0 : index
    %40 = vector.load %arg6[%c16, %c0_11] : memref<144x256xbf16, #tpu.memory_space<vmem>>, vector<16x256xbf16>
    tpu.vector_store %arg6[%c16, %c0_11], %39 {strides = array<i32>} : memref<144x256xbf16, #tpu.memory_space<vmem>>, vector<16x256xbf16>,
    %c15_i32 = arith.constant 15 : i32
    %41 = tpu.dynamic_rotate %2 by %c15_i32 dim 1 : vector<16x256xf32>, i32 -> vector<16x256xf32>
    %c16_i32_12 = arith.constant 16 : i32
    %42 = vector.broadcast %c16_i32_12 : i32 to vector<1x256xi32>
    %43 = arith.cmpi sge, %4, %42 : vector<1x256xi32>
    %c272_i32_13 = arith.constant 272 : i32
    %44 = vector.broadcast %c272_i32_13 : i32 to vector<1x256xi32>
    %45 = arith.cmpi slt, %4, %44 : vector<1x256xi32>
    %46 = arith.andi %43, %45 : vector<1x256xi1>
    %c-1_i32 = arith.constant -1 : i32
    %47 = vector.broadcast %c-1_i32 : i32 to vector<1x256xi32>
    %48 = arith.cmpi sge, %3, %47 : vector<1x256xi32>
    %49 = arith.andi %46, %48 : vector<1x256xi1>
    %c15_i32_14 = arith.constant 15 : i32
    %50 = vector.broadcast %c15_i32_14 : i32 to vector<1x256xi32>
    %51 = arith.cmpi slt, %3, %50 : vector<1x256xi32>
    %52 = arith.andi %49, %51 : vector<1x256xi1>
    %53 = arith.extui %52 : vector<1x256xi1> to vector<1x256xi32>
    %54 = arith.sitofp %53 : vector<1x256xi32> to vector<1x256xf32>
    %55 = vector.broadcast %54 : vector<1x256xf32> to vector<16x256xf32>
    %56 = arith.mulf %41, %55 : vector<16x256xf32>
    %57 = arith.truncf %56 : vector<16x256xf32> to vector<16x256xbf16>
    %c32 = arith.constant 32 : index
    %c0_15 = arith.constant 0 : index
    %58 = vector.load %arg6[%c32, %c0_15] : memref<144x256xbf16, #tpu.memory_space<vmem>>, vector<16x256xbf16>
    tpu.vector_store %arg6[%c32, %c0_15], %57 {strides = array<i32>} : memref<144x256xbf16, #tpu.memory_space<vmem>>, vector<16x256xbf16>,
    %c1_i32_16 = arith.constant 1 : i32
    %59 = tpu.dynamic_rotate %2 by %c1_i32_16 dim 1 : vector<16x256xf32>, i32 -> vector<16x256xf32>
    %c0_i32_17 = arith.constant 0 : i32
    %60 = vector.broadcast %c0_i32_17 : i32 to vector<1x256xi32>
    %61 = arith.cmpi sge, %4, %60 : vector<1x256xi32>
    %c256_i32 = arith.constant 256 : i32
    %62 = vector.broadcast %c256_i32 : i32 to vector<1x256xi32>
    %63 = arith.cmpi slt, %4, %62 : vector<1x256xi32>
    %64 = arith.andi %61, %63 : vector<1x256xi1>
    %c1_i32_18 = arith.constant 1 : i32
    %65 = vector.broadcast %c1_i32_18 : i32 to vector<1x256xi32>
    %66 = arith.cmpi sge, %3, %65 : vector<1x256xi32>
    %67 = arith.andi %64, %66 : vector<1x256xi1>
    %c17_i32_19 = arith.constant 17 : i32
    %68 = vector.broadcast %c17_i32_19 : i32 to vector<1x256xi32>
    %69 = arith.cmpi slt, %3, %68 : vector<1x256xi32>
    %70 = arith.andi %67, %69 : vector<1x256xi1>
    %71 = arith.extui %70 : vector<1x256xi1> to vector<1x256xi32>
    %72 = arith.sitofp %71 : vector<1x256xi32> to vector<1x256xf32>
    %73 = vector.broadcast %72 : vector<1x256xf32> to vector<16x256xf32>
    %74 = arith.mulf %59, %73 : vector<16x256xf32>
    %75 = arith.truncf %74 : vector<16x256xf32> to vector<16x256xbf16>
    %c48 = arith.constant 48 : index
    %c0_20 = arith.constant 0 : index
    %76 = vector.load %arg6[%c48, %c0_20] : memref<144x256xbf16, #tpu.memory_space<vmem>>, vector<16x256xbf16>
    tpu.vector_store %arg6[%c48, %c0_20], %75 {strides = array<i32>} : memref<144x256xbf16, #tpu.memory_space<vmem>>, vector<16x256xbf16>,
    %c0_i32_21 = arith.constant 0 : i32
    %77 = vector.broadcast %c0_i32_21 : i32 to vector<1x256xi32>
    %78 = arith.cmpi sge, %4, %77 : vector<1x256xi32>
    %c256_i32_22 = arith.constant 256 : i32
    %79 = vector.broadcast %c256_i32_22 : i32 to vector<1x256xi32>
    %80 = arith.cmpi slt, %4, %79 : vector<1x256xi32>
    %81 = arith.andi %78, %80 : vector<1x256xi1>
    %c0_i32_23 = arith.constant 0 : i32
    %82 = vector.broadcast %c0_i32_23 : i32 to vector<1x256xi32>
    %83 = arith.cmpi sge, %3, %82 : vector<1x256xi32>
    %84 = arith.andi %81, %83 : vector<1x256xi1>
    %c16_i32_24 = arith.constant 16 : i32
    %85 = vector.broadcast %c16_i32_24 : i32 to vector<1x256xi32>
    %86 = arith.cmpi slt, %3, %85 : vector<1x256xi32>
    %87 = arith.andi %84, %86 : vector<1x256xi1>
    %88 = arith.extui %87 : vector<1x256xi1> to vector<1x256xi32>
    %89 = arith.sitofp %88 : vector<1x256xi32> to vector<1x256xf32>
    %90 = vector.broadcast %89 : vector<1x256xf32> to vector<16x256xf32>
    %91 = arith.mulf %2, %90 : vector<16x256xf32>
    %92 = arith.truncf %91 : vector<16x256xf32> to vector<16x256xbf16>
    %c64 = arith.constant 64 : index
    %c0_25 = arith.constant 0 : index
    %93 = vector.load %arg6[%c64, %c0_25] : memref<144x256xbf16, #tpu.memory_space<vmem>>, vector<16x256xbf16>
    tpu.vector_store %arg6[%c64, %c0_25], %92 {strides = array<i32>} : memref<144x256xbf16, #tpu.memory_space<vmem>>, vector<16x256xbf16>,
    %c255_i32 = arith.constant 255 : i32
    %94 = tpu.dynamic_rotate %2 by %c255_i32 dim 1 : vector<16x256xf32>, i32 -> vector<16x256xf32>
    %c0_i32_26 = arith.constant 0 : i32
    %95 = vector.broadcast %c0_i32_26 : i32 to vector<1x256xi32>
    %96 = arith.cmpi sge, %4, %95 : vector<1x256xi32>
    %c256_i32_27 = arith.constant 256 : i32
    %97 = vector.broadcast %c256_i32_27 : i32 to vector<1x256xi32>
    %98 = arith.cmpi slt, %4, %97 : vector<1x256xi32>
    %99 = arith.andi %96, %98 : vector<1x256xi1>
    %c-1_i32_28 = arith.constant -1 : i32
    %100 = vector.broadcast %c-1_i32_28 : i32 to vector<1x256xi32>
    %101 = arith.cmpi sge, %3, %100 : vector<1x256xi32>
    %102 = arith.andi %99, %101 : vector<1x256xi1>
    %c15_i32_29 = arith.constant 15 : i32
    %103 = vector.broadcast %c15_i32_29 : i32 to vector<1x256xi32>
    %104 = arith.cmpi slt, %3, %103 : vector<1x256xi32>
    %105 = arith.andi %102, %104 : vector<1x256xi1>
    %106 = arith.extui %105 : vector<1x256xi1> to vector<1x256xi32>
    %107 = arith.sitofp %106 : vector<1x256xi32> to vector<1x256xf32>
    %108 = vector.broadcast %107 : vector<1x256xf32> to vector<16x256xf32>
    %109 = arith.mulf %94, %108 : vector<16x256xf32>
    %110 = arith.truncf %109 : vector<16x256xf32> to vector<16x256xbf16>
    %c80 = arith.constant 80 : index
    %c0_30 = arith.constant 0 : index
    %111 = vector.load %arg6[%c80, %c0_30] : memref<144x256xbf16, #tpu.memory_space<vmem>>, vector<16x256xbf16>
    tpu.vector_store %arg6[%c80, %c0_30], %110 {strides = array<i32>} : memref<144x256xbf16, #tpu.memory_space<vmem>>, vector<16x256xbf16>,
    %c241_i32 = arith.constant 241 : i32
    %112 = tpu.dynamic_rotate %2 by %c241_i32 dim 1 : vector<16x256xf32>, i32 -> vector<16x256xf32>
    %c-16_i32 = arith.constant -16 : i32
    %113 = vector.broadcast %c-16_i32 : i32 to vector<1x256xi32>
    %114 = arith.cmpi sge, %4, %113 : vector<1x256xi32>
    %c240_i32 = arith.constant 240 : i32
    %115 = vector.broadcast %c240_i32 : i32 to vector<1x256xi32>
    %116 = arith.cmpi slt, %4, %115 : vector<1x256xi32>
    %117 = arith.andi %114, %116 : vector<1x256xi1>
    %c1_i32_31 = arith.constant 1 : i32
    %118 = vector.broadcast %c1_i32_31 : i32 to vector<1x256xi32>
    %119 = arith.cmpi sge, %3, %118 : vector<1x256xi32>
    %120 = arith.andi %117, %119 : vector<1x256xi1>
    %c17_i32_32 = arith.constant 17 : i32
    %121 = vector.broadcast %c17_i32_32 : i32 to vector<1x256xi32>
    %122 = arith.cmpi slt, %3, %121 : vector<1x256xi32>
    %123 = arith.andi %120, %122 : vector<1x256xi1>
    %124 = arith.extui %123 : vector<1x256xi1> to vector<1x256xi32>
    %125 = arith.sitofp %124 : vector<1x256xi32> to vector<1x256xf32>
    %126 = vector.broadcast %125 : vector<1x256xf32> to vector<16x256xf32>
    %127 = arith.mulf %112, %126 : vector<16x256xf32>
    %128 = arith.truncf %127 : vector<16x256xf32> to vector<16x256xbf16>
    %c96 = arith.constant 96 : index
    %c0_33 = arith.constant 0 : index
    %129 = vector.load %arg6[%c96, %c0_33] : memref<144x256xbf16, #tpu.memory_space<vmem>>, vector<16x256xbf16>
    tpu.vector_store %arg6[%c96, %c0_33], %128 {strides = array<i32>} : memref<144x256xbf16, #tpu.memory_space<vmem>>, vector<16x256xbf16>,
    %c240_i32_34 = arith.constant 240 : i32
    %130 = tpu.dynamic_rotate %2 by %c240_i32_34 dim 1 : vector<16x256xf32>, i32 -> vector<16x256xf32>
    %c-16_i32_35 = arith.constant -16 : i32
    %131 = vector.broadcast %c-16_i32_35 : i32 to vector<1x256xi32>
    %132 = arith.cmpi sge, %4, %131 : vector<1x256xi32>
    %c240_i32_36 = arith.constant 240 : i32
    %133 = vector.broadcast %c240_i32_36 : i32 to vector<1x256xi32>
    %134 = arith.cmpi slt, %4, %133 : vector<1x256xi32>
    %135 = arith.andi %132, %134 : vector<1x256xi1>
    %c0_i32_37 = arith.constant 0 : i32
    %136 = vector.broadcast %c0_i32_37 : i32 to vector<1x256xi32>
    %137 = arith.cmpi sge, %3, %136 : vector<1x256xi32>
    %138 = arith.andi %135, %137 : vector<1x256xi1>
    %c16_i32_38 = arith.constant 16 : i32
    %139 = vector.broadcast %c16_i32_38 : i32 to vector<1x256xi32>
    %140 = arith.cmpi slt, %3, %139 : vector<1x256xi32>
    %141 = arith.andi %138, %140 : vector<1x256xi1>
    %142 = arith.extui %141 : vector<1x256xi1> to vector<1x256xi32>
    %143 = arith.sitofp %142 : vector<1x256xi32> to vector<1x256xf32>
    %144 = vector.broadcast %143 : vector<1x256xf32> to vector<16x256xf32>
    %145 = arith.mulf %130, %144 : vector<16x256xf32>
    %146 = arith.truncf %145 : vector<16x256xf32> to vector<16x256xbf16>
    %c112 = arith.constant 112 : index
    %c0_39 = arith.constant 0 : index
    %147 = vector.load %arg6[%c112, %c0_39] : memref<144x256xbf16, #tpu.memory_space<vmem>>, vector<16x256xbf16>
    tpu.vector_store %arg6[%c112, %c0_39], %146 {strides = array<i32>} : memref<144x256xbf16, #tpu.memory_space<vmem>>, vector<16x256xbf16>,
    %c239_i32 = arith.constant 239 : i32
    %148 = tpu.dynamic_rotate %2 by %c239_i32 dim 1 : vector<16x256xf32>, i32 -> vector<16x256xf32>
    %c-16_i32_40 = arith.constant -16 : i32
    %149 = vector.broadcast %c-16_i32_40 : i32 to vector<1x256xi32>
    %150 = arith.cmpi sge, %4, %149 : vector<1x256xi32>
    %c240_i32_41 = arith.constant 240 : i32
    %151 = vector.broadcast %c240_i32_41 : i32 to vector<1x256xi32>
    %152 = arith.cmpi slt, %4, %151 : vector<1x256xi32>
    %153 = arith.andi %150, %152 : vector<1x256xi1>
    %c-1_i32_42 = arith.constant -1 : i32
    %154 = vector.broadcast %c-1_i32_42 : i32 to vector<1x256xi32>
    %155 = arith.cmpi sge, %3, %154 : vector<1x256xi32>
    %156 = arith.andi %153, %155 : vector<1x256xi1>
    %c15_i32_43 = arith.constant 15 : i32
    %157 = vector.broadcast %c15_i32_43 : i32 to vector<1x256xi32>
    %158 = arith.cmpi slt, %3, %157 : vector<1x256xi32>
    %159 = arith.andi %156, %158 : vector<1x256xi1>
    %160 = arith.extui %159 : vector<1x256xi1> to vector<1x256xi32>
    %161 = arith.sitofp %160 : vector<1x256xi32> to vector<1x256xf32>
    %162 = vector.broadcast %161 : vector<1x256xf32> to vector<16x256xf32>
    %163 = arith.mulf %148, %162 : vector<16x256xf32>
    %164 = arith.truncf %163 : vector<16x256xf32> to vector<16x256xbf16>
    %c128 = arith.constant 128 : index
    %c0_44 = arith.constant 0 : index
    %165 = vector.load %arg6[%c128, %c0_44] : memref<144x256xbf16, #tpu.memory_space<vmem>>, vector<16x256xbf16>
    tpu.vector_store %arg6[%c128, %c0_44], %164 {strides = array<i32>} : memref<144x256xbf16, #tpu.memory_space<vmem>>, vector<16x256xbf16>,
    %c0_45 = arith.constant 0 : index
    %c0_46 = arith.constant 0 : index
    %166 = vector.load %arg3[%c0_45, %c0_46] : memref<8x144xbf16, #tpu.memory_space<vmem>>, vector<8x144xbf16>
    %c0_47 = arith.constant 0 : index
    %c0_48 = arith.constant 0 : index
    %167 = vector.load %arg6[%c0_47, %c0_48] : memref<144x256xbf16, #tpu.memory_space<vmem>>, vector<144x256xbf16>
    %cst = arith.constant dense<0.000000e+00> : vector<8x256xf32>
    %168 = tpu.matmul %166, %167, %cst {dimension_numbers = #tpu.dot_dimension_numbers<[1], [0], [0], [1], [0, 0, 1, 1], [], []>} : vector<8x144xbf16>, vector<144x256xbf16>, vector<8x256xf32> -> vector<8x256xf32>
    %c0_49 = arith.constant 0 : index
    %c0_50 = arith.constant 0 : index
    %169 = vector.load %arg4[%c0_49, %c0_50] : memref<8x1xf32, #tpu.memory_space<vmem>>, vector<8x1xf32>
    %170 = vector.broadcast %169 : vector<8x1xf32> to vector<8x256xf32>
    %171 = arith.addf %168, %170 : vector<8x256xf32>
    %cst_51 = arith.constant 0.000000e+00 : f32
    %172 = vector.broadcast %cst_51 : f32 to vector<8x256xf32>
    %173 = arith.maximumf %171, %172 : vector<8x256xf32>
    %c0_52 = arith.constant 0 : index
    %c0_53 = arith.constant 0 : index
    %c0_54 = arith.constant 0 : index
    %174 = vector.load %arg5[%c0_52, %c0_53, %c0_54] : memref<1x8x256xf32, #tpu.memory_space<vmem>>, vector<1x8x256xf32>
    %175 = vector.shape_cast %174 : vector<1x8x256xf32> to vector<8x256xf32>
    %176 = vector.shape_cast %173 : vector<8x256xf32> to vector<1x8x256xf32>
    tpu.vector_store %arg5[%c0_52, %c0_53, %c0_54], %176 {strides = array<i32>} : memref<1x8x256xf32, #tpu.memory_space<vmem>>, vector<1x8x256xf32>,
    return
  }
  func.func @transform_0(%arg0: i32) -> (i32, i32, i32) {
    %c0_i32 = arith.constant 0 : i32
    %c0_i32_0 = arith.constant 0 : i32
    %c0_i32_1 = arith.constant 0 : i32
    return %arg0, %c0_i32, %c0_i32_0 : i32, i32, i32
  }
  func.func @transform_1(%arg0: i32) -> (i32, i32) {
    %c0_i32 = arith.constant 0 : i32
    %c0_i32_0 = arith.constant 0 : i32
    %c0_i32_1 = arith.constant 0 : i32
    return %c0_i32, %c0_i32_0 : i32, i32
  }
  func.func @transform_2(%arg0: i32) -> (i32, i32) {
    %c0_i32 = arith.constant 0 : i32
    %c0_i32_0 = arith.constant 0 : i32
    %c0_i32_1 = arith.constant 0 : i32
    return %c0_i32, %c0_i32_0 : i32, i32
  }
  func.func @transform_3(%arg0: i32) -> (i32, i32) {
    %c0_i32 = arith.constant 0 : i32
    %c0_i32_0 = arith.constant 0 : i32
    %c0_i32_1 = arith.constant 0 : i32
    return %c0_i32, %c0_i32_0 : i32, i32
  }
  func.func @transform_4(%arg0: i32) -> (i32, i32, i32) {
    %c0_i32 = arith.constant 0 : i32
    %c0_i32_0 = arith.constant 0 : i32
    %c0_i32_1 = arith.constant 0 : i32
    return %arg0, %c0_i32, %c0_i32_0 : i32, i32, i32
  }
}

</mosaic_0001>

<llo_original>
// kernel: tpu_custom_call.1
$region0: #{tpu_custom_call.1}
  #allocation0 [shape = 'u32[]', space=smem, size = 0x4, offset = 0x4, fixed_abs, tag = 'smem constant byte address 0x4 - core index']
  #allocation1 [shape = 'u32[144,128]{1,0:T(1,128)}', space=vmem, size = 0x12000, scoped, tag = 'internal scratch']
  #allocation2 [shape = 'bf16[144,256]{1,0:T(16,128)(2,1)}', space=vmem, size = 0x12000, scoped, tag = 'scratch operand']
  %s0 = inlined_call_operand.hbm [shape: bf16[2,16,256], index: 0, kind: input, shape index: {}]
  %s1 = inlined_call_operand.vmem [shape: s32[1,256], index: 1, kind: input, shape index: {}]
  %s2 = inlined_call_operand.vmem [shape: bf16[8,144], index: 2, kind: input, shape index: {}]
  %s3 = inlined_call_operand.vmem [shape: f32[8,1], index: 3, kind: input, shape index: {}]
  %s4 = inlined_call_operand.hbm [shape: f32[2,8,256], index: 4, kind: output, shape index: {}]
  %s5 = sld [smem:[#allocation0]]
  $region53: #{tpu_custom_call.1} parent=0
    _
  %s7 = ssub.s32 1, %s5
  %s8 = scalar_select 0, %s7, %s5
  $region1: #{tpu_custom_call.1} parent=0
    #allocation3 [shape = 'u8[16384]{0}', space=vmem, size = 0x4000, scoped, tag = 'input window, operand 0']
    #allocation4 [shape = 's32[2]{0}', space=sflag, size = 0x8, scoped, tag = 'scoped memory for tpu_custom_call.1']
    #allocation5 [shape = 's32[2]{0}', space=sflag, size = 0x8, scoped, tag = 'scoped memory for tpu_custom_call.1']
    #allocation6 [shape = 'u8[16384]{0}', space=vmem, size = 0x4000, scoped, tag = 'output window, operand 0']
    %9 = vsyncpa [#allocation4], 0
    %s10 = scalar_lea.sflag [#allocation4], 1
    %11 = vsyncpa %s10, 0
    %12 = vsyncpa [#allocation5], 0
    %s13 = scalar_lea.sflag [#allocation5], 1
    %14 = vsyncpa %s13, 0
    loop: start=0, step=1, limit=4
    $region2: #{tpu_custom_call.1} parent=1 // loop_pre_header
      _
    $region3: #{tpu_custom_call.1} parent=1 // loop_header
      %s16 = sphi 0, %s20
      %p17 = scmp.ge.s32.totalorder %s16, 4
      %s26 = sphi 0, %s28
      %s29 = sphi 0, %s26
      %s30 = sphi 0, %s29
      %s46 = sphi 0, %s30
      %s50 = sphi 0, %s50
      %s52 = sphi 0, %s50
      %s53 = sphi 0, %s52
      %s67 = sphi 0, %s53
      %s71 = sphi 0, %s71
      %s73 = sphi 0, %s71
      %s74 = sphi 0, %s73
      %s88 = sphi 0, %s74
      %s92 = sphi 0, %s92
      %s94 = sphi 0, %s92
      %s95 = sphi 0, %s94
      %s109 = sphi 0, %s95
      %s115 = sphi 0, %s117
      %s118 = sphi 0, %s115
      %s119 = sphi 0, %s118
      %s135 = sphi 0, %s119
    $region4: #{tpu_custom_call.1} parent=1 // loop_header_branch
      %19 = sbr.rel (%p17) target = $region8
    $region5: #{tpu_custom_call.1} parent=1 // loop_body
      %s21 = ssub.s32 %s16, 1
      %s22 = ssub.s32 %s16, 2
      %s23 = sadd.s32 %s16, 1
      %s24 = ssub.s32 %s16, %s23
      %p25 = scmp.eq.s32.totalorder %s24, 0
      %s27 = sadd.s32 %s26, 1
      %s28 = scalar_select %p25, %s26, %s27
      %p31 = pneg %p25
      %p32 = scmp.eq.s32.totalorder %s16, 1
      %p33 = por %p31, %p32
      %p34 = scmp.ne.s32.totalorder %s26, %s29
      %p35 = scmp.eq.s32.totalorder %s16, 0
      %p36 = por %p34, %p35
      %p37 = scmp.ne.s32.totalorder %s26, %s29
      %p38 = scmp.eq.s32.totalorder %s21, 1
      %p39 = por %p37, %p38
      %p40 = scmp.ne.s32.totalorder %s29, %s30
      %p41 = scmp.eq.s32.totalorder %s21, 0
      %p42 = por %p40, %p41
      %p43 = scmp.ne.s32.totalorder %s29, %s30
      %p44 = scmp.eq.s32.totalorder %s22, 1
      %p45 = por %p43, %p44
      %p47 = scmp.ne.s32.totalorder %s30, %s46
      %p48 = scmp.eq.s32.totalorder %s22, 0
      %p49 = por %p47, %p48
      %s51 = sadd.s32 %s50, 1
      %p54 = scmp.eq.s32.totalorder %s16, 1
      %p55 = scmp.ne.s32.totalorder %s50, %s52
      %p56 = scmp.eq.s32.totalorder %s16, 0
      %p57 = por %p55, %p56
      %p58 = scmp.ne.s32.totalorder %s50, %s52
      %p59 = scmp.eq.s32.totalorder %s21, 1
      %p60 = por %p58, %p59
      %p61 = scmp.ne.s32.totalorder %s52, %s53
      %p62 = scmp.eq.s32.totalorder %s21, 0
      %p63 = por %p61, %p62
      %p64 = scmp.ne.s32.totalorder %s52, %s53
      %p65 = scmp.eq.s32.totalorder %s22, 1
      %p66 = por %p64, %p65
      %p68 = scmp.ne.s32.totalorder %s53, %s67
      %p69 = scmp.eq.s32.totalorder %s22, 0
      %p70 = por %p68, %p69
      %s72 = sadd.s32 %s71, 1
      %p75 = scmp.eq.s32.totalorder %s16, 1
      %p76 = scmp.ne.s32.totalorder %s71, %s73
      %p77 = scmp.eq.s32.totalorder %s16, 0
      %p78 = por %p76, %p77
      %p79 = scmp.ne.s32.totalorder %s71, %s73
      %p80 = scmp.eq.s32.totalorder %s21, 1
      %p81 = por %p79, %p80
      %p82 = scmp.ne.s32.totalorder %s73, %s74
      %p83 = scmp.eq.s32.totalorder %s21, 0
      %p84 = por %p82, %p83
      %p85 = scmp.ne.s32.totalorder %s73, %s74
      %p86 = scmp.eq.s32.totalorder %s22, 1
      %p87 = por %p85, %p86
      %p89 = scmp.ne.s32.totalorder %s74, %s88
      %p90 = scmp.eq.s32.totalorder %s22, 0
      %p91 = por %p89, %p90
      %s93 = sadd.s32 %s92, 1
      %p96 = scmp.eq.s32.totalorder %s16, 1
      %p97 = scmp.ne.s32.totalorder %s92, %s94
      %p98 = scmp.eq.s32.totalorder %s16, 0
      %p99 = por %p97, %p98
      %p100 = scmp.ne.s32.totalorder %s92, %s94
      %p101 = scmp.eq.s32.totalorder %s21, 1
      %p102 = por %p100, %p101
      %p103 = scmp.ne.s32.totalorder %s94, %s95
      %p104 = scmp.eq.s32.totalorder %s21, 0
      %p105 = por %p103, %p104
      %p106 = scmp.ne.s32.totalorder %s94, %s95
      %p107 = scmp.eq.s32.totalorder %s22, 1
      %p108 = por %p106, %p107
      %p110 = scmp.ne.s32.totalorder %s95, %s109
      %p111 = scmp.eq.s32.totalorder %s22, 0
      %p112 = por %p110, %p111
      %s113 = ssub.s32 %s16, %s23
      %p114 = scmp.eq.s32.totalorder %s113, 0
      %s116 = sadd.s32 %s115, 1
      %s117 = scalar_select %p114, %s115, %s116
      %p120 = pneg %p114
      %p121 = scmp.eq.s32.totalorder %s16, 1
      %p122 = por %p120, %p121
      %p123 = scmp.ne.s32.totalorder %s115, %s118
      %p124 = scmp.eq.s32.totalorder %s16, 0
      %p125 = por %p123, %p124
      %p126 = scmp.ne.s32.totalorder %s115, %s118
      %p127 = scmp.eq.s32.totalorder %s21, 1
      %p128 = por %p126, %p127
      %p129 = scmp.ne.s32.totalorder %s118, %s119
      %p130 = scmp.eq.s32.totalorder %s21, 0
      %p131 = por %p129, %p130
      %p132 = scmp.ne.s32.totalorder %s118, %s119
      %p133 = scmp.eq.s32.totalorder %s22, 1
      %p134 = por %p132, %p133
      %p136 = scmp.ne.s32.totalorder %s119, %s135
      %p137 = scmp.eq.s32.totalorder %s22, 0
      %p138 = por %p136, %p137
      %p139 = scmp.le.s32.totalorder 1, %s16
      %p140 = scmp.lt.s32.totalorder %s16, 3
      %p141 = pnand %p139, %p140
      %p142 = pneg %p141
      // Predicated region
      $region9: #{tpu_custom_call.1} parent=5 // pred_check
        _
      $region10: #{tpu_custom_call.1} parent=5 // pred_check_branch
        %144 = sbr.rel (%p141) target = $region12
      $region11: #{tpu_custom_call.1} parent=5 // pred_region
        %s145 = ssub.s32 %s16, 1
        // Predicated region
        $region13: #{tpu_custom_call.1} parent=11 // pred_check
          %p146 = pneg %p63
        $region14: #{tpu_custom_call.1} parent=11 // pred_check_branch
          %148 = sbr.rel (%p146) target = $region16
        $region15: #{tpu_custom_call.1} parent=11 // pred_region
          _
        $region16: #{tpu_custom_call.1} parent=11 // pred_fallthru
          _
        // Predicated region
        $region17: #{tpu_custom_call.1} parent=11 // pred_check
          %p149 = pneg %p84
        $region18: #{tpu_custom_call.1} parent=11 // pred_check_branch
          %151 = sbr.rel (%p149) target = $region20
        $region19: #{tpu_custom_call.1} parent=11 // pred_region
          _
        $region20: #{tpu_custom_call.1} parent=11 // pred_fallthru
          _
        // Predicated region
        $region21: #{tpu_custom_call.1} parent=11 // pred_check
          %p152 = pneg %p105
        $region22: #{tpu_custom_call.1} parent=11 // pred_check_branch
          %154 = sbr.rel (%p152) target = $region24
        $region23: #{tpu_custom_call.1} parent=11 // pred_region
          _
        $region24: #{tpu_custom_call.1} parent=11 // pred_fallthru
          _
      $region12: #{tpu_custom_call.1} parent=5 // pred_fallthru
        _
      %p155 = scmp.lt.s32.totalorder %s16, 2
      // Predicated region
      $region25: #{tpu_custom_call.1} parent=5 // pred_check
        %p156 = pneg %p155
      $region26: #{tpu_custom_call.1} parent=5 // pred_check_branch
        %158 = sbr.rel (%p156) target = $region28
      $region27: #{tpu_custom_call.1} parent=5 // pred_region
        // Predicated region
        $region29: #{tpu_custom_call.1} parent=27 // pred_check
          %p159 = pneg %p36
        $region30: #{tpu_custom_call.1} parent=27 // pred_check_branch
          %161 = sbr.rel (%p159) target = $region32
        $region31: #{tpu_custom_call.1} parent=27 // pred_region
          %s162 = sand.u32 %s26, 1
          %s163 = scalar_lea.sflag [#allocation4], %s162
          %s164 = sand.u32 %s26, 1
          %s165 = smul.addr %s164, 16
          %s166 = scalar_lea.vmem [#allocation3], %s165
          %s168 = ssub.s32 256, 256
          %169 = vsyncadd %s163, %s168
          %s170 = smul.addr %s16, 4
          %s171 = smul.addr %s170, 64
          %s172 = scalar_lea.hbm %s0, %s171
          %s173 = sshll.u32 %s166, 4
          %s174 = int_to_ptr.vmem [resolvable:$true] %s173
          %179 = dma.hbm_to_vmem [thread:$0]  %s172, 256, %s174, %s163, 128, 128, 8
        $region32: #{tpu_custom_call.1} parent=27 // pred_fallthru
          _
      $region28: #{tpu_custom_call.1} parent=5 // pred_fallthru
        _
      %p180 = scmp.le.s32.totalorder 1, %s16
      %p181 = scmp.lt.s32.totalorder %s16, 3
      %p182 = pnand %p180, %p181
      %p183 = pneg %p182
      // Predicated region
      $region33: #{tpu_custom_call.1} parent=5 // pred_check
        _
      $region34: #{tpu_custom_call.1} parent=5 // pred_check_branch
        %185 = sbr.rel (%p182) target = $region36
      $region35: #{tpu_custom_call.1} parent=5 // pred_region
        %s186 = ssub.s32 %s16, 1
        %s187 = sand.u32 %s29, 1
        %s188 = scalar_lea.sflag [#allocation4], %s187
        %s189 = sand.u32 %s29, 1
        %s190 = smul.addr %s189, 16
        %s191 = scalar_lea.vmem [#allocation3], %s190
        // Predicated region
        $region37: #{tpu_custom_call.1} parent=35 // pred_check
          %p192 = pneg %p42
        $region38: #{tpu_custom_call.1} parent=35 // pred_check_branch
          %194 = sbr.rel (%p192) target = $region40
        $region39: #{tpu_custom_call.1} parent=35 // pred_region
          %195 = dma.done %s188, 256
        $region40: #{tpu_custom_call.1} parent=35 // pred_fallthru
          _
        %s196 = sand.u32 %s29, 1
        %s197 = scalar_lea.sflag [#allocation4], %s196
        %s198 = sand.u32 %s29, 1
        %s199 = smul.addr %s198, 16
        %s200 = scalar_lea.vmem [#allocation3], %s199
        %p201 = pneg %p42
        %p202 = pneg %p39
        %p203 = pneg %p63
        %p204 = pneg %p60
        %p205 = pneg %p84
        %p206 = pneg %p81
        %p207 = pneg %p105
        %p208 = pneg %p102
        %p209 = pneg %p131
        %p210 = pneg %p128
        %s211 = sand.u32 %s118, 1
        %s212 = scalar_lea.sflag [#allocation5], %s211
        %s213 = sand.u32 %s118, 1
        %s214 = smul.addr %s213, 16
        %s215 = scalar_lea.vmem [#allocation6], %s214
        %v217 = vld [vmem:[%s191] sm:$0xff]
        %v218 = vld [vmem:[%s191 + $0x8] sm:$0xff]
        %v219 = vunpack.c.l.bf16 %v217
        %v220 = vunpack.c.h.bf16 %v217
        %v221 = vunpack.c.l.bf16 %v218
        %v222 = vunpack.c.h.bf16 %v218
        %v223 = vld [vmem:[%s1] sm:$0x3]
        %v224 = vlaneseq
        %v225 = vand.u32 %v224, 127
        %v226 = vadd.s32 %v225, 128
        %227 = vrot.lane.b32.xlu0 %v219, 17
        %v228 = vpop.permute.xlu0 %227
        %229 = vrot.lane.b32.xlu0 %v221, 17
        %v230 = vpop.permute.xlu0 %229
        %231 = vrot.lane.b32.xlu0 %v220, 17
        %v232 = vpop.permute.xlu0 %231
        %233 = vrot.lane.b32.xlu0 %v222, 17
        %v234 = vpop.permute.xlu0 %233
        %vm235 = vcmp.lt.s32.totalorder %v225, 17
        %v236 = vsel %vm235, %v228, %v232
        %v237 = vsel %vm235, %v230, %v234
        %v238 = vsel %vm235, %v232, %v228
        %v239 = vsel %vm235, %v234, %v230
        %vm240 = vcmp.ge.s32.totalorder %v225, 16
        %vm241 = vcmp.ge.s32.totalorder %v226, 16
        %vm242 = vcmp.lt.s32.totalorder %v225, 272
        %vm243 = vcmp.lt.s32.totalorder %v226, 272
        %vm244 = vmand %vm240, %vm242
        %vm245 = vmand %vm241, %vm243
        %vm246 = vcmp.ge.s32.totalorder %v223, 1
        %v247 = vsel %vm246, 1, 0
        %v248 = vlaneseq
        %v249 = vshrl.u32 %v248, 7
        %v250 = vsub.s32 0, %v249
        %v251 = vrot.slane %v247, %v250
        %v252 = vlaneseq
        %v253 = vshrl.u32 %v252, 7
        %v254 = vsub.s32 1, %v253
        %v255 = vrot.slane %v247, %v254
        %vm256 = vcmp.ne.s32.totalorder %v251, 0
        %vm257 = vcmp.ne.s32.totalorder %v255, 0
        %vm258 = vmand %vm244, %vm256
        %vm259 = vmand %vm245, %vm257
        %vm260 = vcmp.lt.s32.totalorder %v223, 17
        %v261 = vsel %vm260, 1, 0
        %v262 = vlaneseq
        %v263 = vshrl.u32 %v262, 7
        %v264 = vsub.s32 0, %v263
        %v265 = vrot.slane %v261, %v264
        %v266 = vlaneseq
        %v267 = vshrl.u32 %v266, 7
        %v268 = vsub.s32 1, %v267
        %v269 = vrot.slane %v261, %v268
        %vm270 = vcmp.ne.s32.totalorder %v265, 0
        %vm271 = vcmp.ne.s32.totalorder %v269, 0
        %vm272 = vmand %vm258, %vm270
        %vm273 = vmand %vm259, %vm271
        %v274 = vsel %vm272, 1, 0
        %v275 = vsel %vm273, 1, 0
        %v276 = vcvt.s32.f32 %v274
        %v277 = vcvt.s32.f32 %v275
        %v278 = vlaneseq
        %v279 = vshrl.u32 %v278, 7
        %v280 = vsub.s32 0, %v279
        %v281 = vrot.slane %v276, %v280
        %v282 = vlaneseq
        %v283 = vshrl.u32 %v282, 7
        %v284 = vsub.s32 0, %v283
        %v285 = vrot.slane %v277, %v284
        %v286 = vmul.f32 %v238, %v281
        %v287 = vmul.f32 %v236, %v285
        %v288 = vmul.f32 %v239, %v281
        %v289 = vmul.f32 %v237, %v285
        %v290 = vpack.c.bf16 %v288, %v286
        %v291 = vpack.c.bf16 %v289, %v287
        %292 = vst [vmem:[#allocation2] sm:$0xff] %v290
        %293 = vst [vmem:[#allocation2 + $0x8] sm:$0xff] %v291
        %294 = vrot.lane.b32.xlu0 %v219, 16
        %v295 = vpop.permute.xlu0 %294
        %296 = vrot.lane.b32.xlu0 %v221, 16
        %v297 = vpop.permute.xlu0 %296
        %298 = vrot.lane.b32.xlu0 %v220, 16
        %v299 = vpop.permute.xlu0 %298
        %300 = vrot.lane.b32.xlu0 %v222, 16
        %v301 = vpop.permute.xlu0 %300
        %vm302 = vcmp.lt.s32.totalorder %v225, 16
        %v303 = vsel %vm302, %v295, %v299
        %v304 = vsel %vm302, %v297, %v301
        %v305 = vsel %vm302, %v299, %v295
        %v306 = vsel %vm302, %v301, %v297
        %vm307 = vcmp.ge.s32.totalorder %v223, 0
        %v308 = vsel %vm307, 1, 0
        %v309 = vlaneseq
        %v310 = vshrl.u32 %v309, 7
        %v311 = vsub.s32 0, %v310
        %v312 = vrot.slane %v308, %v311
        %v313 = vlaneseq
        %v314 = vshrl.u32 %v313, 7
        %v315 = vsub.s32 1, %v314
        %v316 = vrot.slane %v308, %v315
        %vm317 = vcmp.ne.s32.totalorder %v312, 0
        %vm318 = vcmp.ne.s32.totalorder %v316, 0
        %vm319 = vmand %vm244, %vm317
        %vm320 = vmand %vm245, %vm318
        %vm321 = vcmp.lt.s32.totalorder %v223, 16
        %v322 = vsel %vm321, 1, 0
        %v323 = vlaneseq
        %v324 = vshrl.u32 %v323, 7
        %v325 = vsub.s32 0, %v324
        %v326 = vrot.slane %v322, %v325
        %v327 = vlaneseq
        %v328 = vshrl.u32 %v327, 7
        %v329 = vsub.s32 1, %v328
        %v330 = vrot.slane %v322, %v329
        %vm331 = vcmp.ne.s32.totalorder %v326, 0
        %vm332 = vcmp.ne.s32.totalorder %v330, 0
        %vm333 = vmand %vm319, %vm331
        %vm334 = vmand %vm320, %vm332
        %v335 = vsel %vm333, 1, 0
        %v336 = vsel %vm334, 1, 0
        %v337 = vcvt.s32.f32 %v335
        %v338 = vcvt.s32.f32 %v336
        %v339 = vlaneseq
        %v340 = vshrl.u32 %v339, 7
        %v341 = vsub.s32 0, %v340
        %v342 = vrot.slane %v337, %v341
        %v343 = vlaneseq
        %v344 = vshrl.u32 %v343, 7
        %v345 = vsub.s32 0, %v344
        %v346 = vrot.slane %v338, %v345
        %v347 = vmul.f32 %v305, %v342
        %v348 = vmul.f32 %v303, %v346
        %v349 = vmul.f32 %v306, %v342
        %v350 = vmul.f32 %v304, %v346
        %v351 = vpack.c.bf16 %v349, %v347
        %v352 = vpack.c.bf16 %v350, %v348
        %353 = vst [vmem:[#allocation2 + $0x10] sm:$0xff] %v351
        %354 = vst [vmem:[#allocation2 + $0x18] sm:$0xff] %v352
        %355 = vrot.lane.b32.xlu0 %v219, 15
        %v356 = vpop.permute.xlu0 %355
        %357 = vrot.lane.b32.xlu0 %v221, 15
        %v358 = vpop.permute.xlu0 %357
        %359 = vrot.lane.b32.xlu0 %v220, 15
        %v360 = vpop.permute.xlu0 %359
        %361 = vrot.lane.b32.xlu0 %v222, 15
        %v362 = vpop.permute.xlu0 %361
        %vm363 = vcmp.lt.s32.totalorder %v225, 15
        %v364 = vsel %vm363, %v356, %v360
        %v365 = vsel %vm363, %v358, %v362
        %v366 = vsel %vm363, %v360, %v356
        %v367 = vsel %vm363, %v362, %v358
        %vm368 = vcmp.ge.s32.totalorder %v223, 4294967295
        %v369 = vsel %vm368, 1, 0
        %v370 = vlaneseq
        %v371 = vshrl.u32 %v370, 7
        %v372 = vsub.s32 0, %v371
        %v373 = vrot.slane %v369, %v372
        %v374 = vlaneseq
        %v375 = vshrl.u32 %v374, 7
        %v376 = vsub.s32 1, %v375
        %v377 = vrot.slane %v369, %v376
        %vm378 = vcmp.ne.s32.totalorder %v373, 0
        %vm379 = vcmp.ne.s32.totalorder %v377, 0
        %vm380 = vmand %vm244, %vm378
        %vm381 = vmand %vm245, %vm379
        %vm382 = vcmp.lt.s32.totalorder %v223, 15
        %v383 = vsel %vm382, 1, 0
        %v384 = vlaneseq
        %v385 = vshrl.u32 %v384, 7
        %v386 = vsub.s32 0, %v385
        %v387 = vrot.slane %v383, %v386
        %v388 = vlaneseq
        %v389 = vshrl.u32 %v388, 7
        %v390 = vsub.s32 1, %v389
        %v391 = vrot.slane %v383, %v390
        %vm392 = vcmp.ne.s32.totalorder %v387, 0
        %vm393 = vcmp.ne.s32.totalorder %v391, 0
        %vm394 = vmand %vm380, %vm392
        %vm395 = vmand %vm381, %vm393
        %v396 = vsel %vm394, 1, 0
        %v397 = vsel %vm395, 1, 0
        %v398 = vcvt.s32.f32 %v396
        %v399 = vcvt.s32.f32 %v397
        %v400 = vlaneseq
        %v401 = vshrl.u32 %v400, 7
        %v402 = vsub.s32 0, %v401
        %v403 = vrot.slane %v398, %v402
        %v404 = vlaneseq
        %v405 = vshrl.u32 %v404, 7
        %v406 = vsub.s32 0, %v405
        %v407 = vrot.slane %v399, %v406
        %v408 = vmul.f32 %v366, %v403
        %v409 = vmul.f32 %v364, %v407
        %v410 = vmul.f32 %v367, %v403
        %v411 = vmul.f32 %v365, %v407
        %v412 = vpack.c.bf16 %v410, %v408
        %v413 = vpack.c.bf16 %v411, %v409
        %414 = vst [vmem:[#allocation2 + $0x20] sm:$0xff] %v412
        %415 = vst [vmem:[#allocation2 + $0x28] sm:$0xff] %v413
        %416 = vrot.lane.b32.xlu0 %v219, 1
        %v417 = vpop.permute.xlu0 %416
        %418 = vrot.lane.b32.xlu0 %v221, 1
        %v419 = vpop.permute.xlu0 %418
        %420 = vrot.lane.b32.xlu0 %v220, 1
        %v421 = vpop.permute.xlu0 %420
        %422 = vrot.lane.b32.xlu0 %v222, 1
        %v423 = vpop.permute.xlu0 %422
        %vm424 = vcmp.lt.s32.totalorder %v225, 1
        %v425 = vsel %vm424, %v417, %v421
        %v426 = vsel %vm424, %v419, %v423
        %v427 = vsel %vm424, %v421, %v417
        %v428 = vsel %vm424, %v423, %v419
        %vm429 = vcmp.ge.s32.totalorder %v225, 0
        %vm430 = vcmp.ge.s32.totalorder %v226, 0
        %vm431 = vcmp.lt.s32.totalorder %v225, 256
        %vm432 = vcmp.lt.s32.totalorder %v226, 256
        %vm433 = vmand %vm429, %vm431
        %vm434 = vmand %vm430, %vm432
        %vm435 = vmand %vm433, %vm256
        %vm436 = vmand %vm434, %vm257
        %vm437 = vmand %vm435, %vm270
        %vm438 = vmand %vm436, %vm271
        %v439 = vsel %vm437, 1, 0
        %v440 = vsel %vm438, 1, 0
        %v441 = vcvt.s32.f32 %v439
        %v442 = vcvt.s32.f32 %v440
        %v443 = vlaneseq
        %v444 = vshrl.u32 %v443, 7
        %v445 = vsub.s32 0, %v444
        %v446 = vrot.slane %v441, %v445
        %v447 = vlaneseq
        %v448 = vshrl.u32 %v447, 7
        %v449 = vsub.s32 0, %v448
        %v450 = vrot.slane %v442, %v449
        %v451 = vmul.f32 %v427, %v446
        %v452 = vmul.f32 %v425, %v450
        %v453 = vmul.f32 %v428, %v446
        %v454 = vmul.f32 %v426, %v450
        %v455 = vpack.c.bf16 %v453, %v451
        %v456 = vpack.c.bf16 %v454, %v452
        %457 = vst [vmem:[#allocation2 + $0x30] sm:$0xff] %v455
        %458 = vst [vmem:[#allocation2 + $0x38] sm:$0xff] %v456
        %vm459 = vmand %vm433, %vm317
        %vm460 = vmand %vm434, %vm318
        %vm461 = vmand %vm459, %vm331
        %vm462 = vmand %vm460, %vm332
        %v463 = vsel %vm461, 1, 0
        %v464 = vsel %vm462, 1, 0
        %v465 = vcvt.s32.f32 %v463
        %v466 = vcvt.s32.f32 %v464
        %v467 = vlaneseq
        %v468 = vshrl.u32 %v467, 7
        %v469 = vsub.s32 0, %v468
        %v470 = vrot.slane %v465, %v469
        %v471 = vlaneseq
        %v472 = vshrl.u32 %v471, 7
        %v473 = vsub.s32 0, %v472
        %v474 = vrot.slane %v466, %v473
        %v475 = vmul.f32 %v219, %v470
        %v476 = vmul.f32 %v220, %v474
        %v477 = vmul.f32 %v221, %v470
        %v478 = vmul.f32 %v222, %v474
        %v479 = vpack.c.bf16 %v477, %v475
        %v480 = vpack.c.bf16 %v478, %v476
        %481 = vst [vmem:[#allocation2 + $0x40] sm:$0xff] %v479
        %482 = vst [vmem:[#allocation2 + $0x48] sm:$0xff] %v480
        %483 = vrot.lane.b32.xlu0 %v219, 127
        %v484 = vpop.permute.xlu0 %483
        %485 = vrot.lane.b32.xlu0 %v221, 127
        %v486 = vpop.permute.xlu0 %485
        %487 = vrot.lane.b32.xlu0 %v220, 127
        %v488 = vpop.permute.xlu0 %487
        %489 = vrot.lane.b32.xlu0 %v222, 127
        %v490 = vpop.permute.xlu0 %489
        %vm491 = vcmp.lt.s32.totalorder %v225, 127
        %v492 = vsel %vm491, %v484, %v488
        %v493 = vsel %vm491, %v486, %v490
        %v494 = vsel %vm491, %v488, %v484
        %v495 = vsel %vm491, %v490, %v486
        %vm496 = vmand %vm433, %vm378
        %vm497 = vmand %vm434, %vm379
        %vm498 = vmand %vm496, %vm392
        %vm499 = vmand %vm497, %vm393
        %v500 = vsel %vm498, 1, 0
        %v501 = vsel %vm499, 1, 0
        %v502 = vcvt.s32.f32 %v500
        %v503 = vcvt.s32.f32 %v501
        %v504 = vlaneseq
        %v505 = vshrl.u32 %v504, 7
        %v506 = vsub.s32 0, %v505
        %v507 = vrot.slane %v502, %v506
        %v508 = vlaneseq
        %v509 = vshrl.u32 %v508, 7
        %v510 = vsub.s32 0, %v509
        %v511 = vrot.slane %v503, %v510
        %v512 = vmul.f32 %v492, %v507
        %v513 = vmul.f32 %v494, %v511
        %v514 = vmul.f32 %v493, %v507
        %v515 = vmul.f32 %v495, %v511
        %v516 = vpack.c.bf16 %v514, %v512
        %v517 = vpack.c.bf16 %v515, %v513
        %518 = vst [vmem:[#allocation2 + $0x50] sm:$0xff] %v516
        %519 = vst [vmem:[#allocation2 + $0x58] sm:$0xff] %v517
        %520 = vrot.lane.b32.xlu0 %v219, 113
        %v521 = vpop.permute.xlu0 %520
        %522 = vrot.lane.b32.xlu0 %v221, 113
        %v523 = vpop.permute.xlu0 %522
        %524 = vrot.lane.b32.xlu0 %v220, 113
        %v525 = vpop.permute.xlu0 %524
        %526 = vrot.lane.b32.xlu0 %v222, 113
        %v527 = vpop.permute.xlu0 %526
        %vm528 = vcmp.lt.s32.totalorder %v225, 113
        %v529 = vsel %vm528, %v521, %v525
        %v530 = vsel %vm528, %v523, %v527
        %v531 = vsel %vm528, %v525, %v521
        %v532 = vsel %vm528, %v527, %v523
        %vm533 = vcmp.ge.s32.totalorder %v225, 4294967280
        %vm534 = vcmp.ge.s32.totalorder %v226, 4294967280
        %vm535 = vcmp.lt.s32.totalorder %v225, 240
        %vm536 = vcmp.lt.s32.totalorder %v226, 240
        %vm537 = vmand %vm533, %vm535
        %vm538 = vmand %vm534, %vm536
        %vm539 = vmand %vm537, %vm256
        %vm540 = vmand %vm538, %vm257
        %vm541 = vmand %vm539, %vm270
        %vm542 = vmand %vm540, %vm271
        %v543 = vsel %vm541, 1, 0
        %v544 = vsel %vm542, 1, 0
        %v545 = vcvt.s32.f32 %v543
        %v546 = vcvt.s32.f32 %v544
        %v547 = vlaneseq
        %v548 = vshrl.u32 %v547, 7
        %v549 = vsub.s32 0, %v548
        %v550 = vrot.slane %v545, %v549
        %v551 = vlaneseq
        %v552 = vshrl.u32 %v551, 7
        %v553 = vsub.s32 0, %v552
        %v554 = vrot.slane %v546, %v553
        %v555 = vmul.f32 %v529, %v550
        %v556 = vmul.f32 %v531, %v554
        %v557 = vmul.f32 %v530, %v550
        %v558 = vmul.f32 %v532, %v554
        %v559 = vpack.c.bf16 %v557, %v555
        %v560 = vpack.c.bf16 %v558, %v556
        %561 = vst [vmem:[#allocation2 + $0x60] sm:$0xff] %v559
        %562 = vst [vmem:[#allocation2 + $0x68] sm:$0xff] %v560
        %563 = vrot.lane.b32.xlu0 %v219, 112
        %v564 = vpop.permute.xlu0 %563
        %565 = vrot.lane.b32.xlu0 %v221, 112
        %v566 = vpop.permute.xlu0 %565
        %567 = vrot.lane.b32.xlu0 %v220, 112
        %v568 = vpop.permute.xlu0 %567
        %569 = vrot.lane.b32.xlu0 %v222, 112
        %v570 = vpop.permute.xlu0 %569
        %vm571 = vcmp.lt.s32.totalorder %v225, 112
        %v572 = vsel %vm571, %v564, %v568
        %v573 = vsel %vm571, %v566, %v570
        %v574 = vsel %vm571, %v568, %v564
        %v575 = vsel %vm571, %v570, %v566
        %vm576 = vmand %vm537, %vm317
        %vm577 = vmand %vm538, %vm318
        %vm578 = vmand %vm576, %vm331
        %vm579 = vmand %vm577, %vm332
        %v580 = vsel %vm578, 1, 0
        %v581 = vsel %vm579, 1, 0
        %v582 = vcvt.s32.f32 %v580
        %v583 = vcvt.s32.f32 %v581
        %v584 = vlaneseq
        %v585 = vshrl.u32 %v584, 7
        %v586 = vsub.s32 0, %v585
        %v587 = vrot.slane %v582, %v586
        %v588 = vlaneseq
        %v589 = vshrl.u32 %v588, 7
        %v590 = vsub.s32 0, %v589
        %v591 = vrot.slane %v583, %v590
        %v592 = vmul.f32 %v572, %v587
        %v593 = vmul.f32 %v574, %v591
        %v594 = vmul.f32 %v573, %v587
        %v595 = vmul.f32 %v575, %v591
        %v596 = vpack.c.bf16 %v594, %v592
        %v597 = vpack.c.bf16 %v595, %v593
        %598 = vst [vmem:[#allocation2 + $0x70] sm:$0xff] %v596
        %599 = vst [vmem:[#allocation2 + $0x78] sm:$0xff] %v597
        %600 = vrot.lane.b32.xlu0 %v219, 111
        %v601 = vpop.permute.xlu0 %600
        %602 = vrot.lane.b32.xlu0 %v221, 111
        %v603 = vpop.permute.xlu0 %602
        %604 = vrot.lane.b32.xlu0 %v220, 111
        %v605 = vpop.permute.xlu0 %604
        %606 = vrot.lane.b32.xlu0 %v222, 111
        %v607 = vpop.permute.xlu0 %606
        %vm608 = vcmp.lt.s32.totalorder %v225, 111
        %v609 = vsel %vm608, %v601, %v605
        %v610 = vsel %vm608, %v603, %v607
        %v611 = vsel %vm608, %v605, %v601
        %v612 = vsel %vm608, %v607, %v603
        %vm613 = vmand %vm537, %vm378
        %vm614 = vmand %vm538, %vm379
        %vm615 = vmand %vm613, %vm392
        %vm616 = vmand %vm614, %vm393
        %v617 = vsel %vm615, 1, 0
        %v618 = vsel %vm616, 1, 0
        %v619 = vcvt.s32.f32 %v617
        %v620 = vcvt.s32.f32 %v618
        %v621 = vlaneseq
        %v622 = vshrl.u32 %v621, 7
        %v623 = vsub.s32 0, %v622
        %v624 = vrot.slane %v619, %v623
        %v625 = vlaneseq
        %v626 = vshrl.u32 %v625, 7
        %v627 = vsub.s32 0, %v626
        %v628 = vrot.slane %v620, %v627
        %v629 = vmul.f32 %v609, %v624
        %v630 = vmul.f32 %v611, %v628
        %v631 = vmul.f32 %v610, %v624
        %v632 = vmul.f32 %v612, %v628
        %v633 = vpack.c.bf16 %v631, %v629
        %v634 = vpack.c.bf16 %v632, %v630
        %635 = vst [vmem:[#allocation2 + $0x80] sm:$0xff] %v633
        %636 = vst [vmem:[#allocation2 + $0x88] sm:$0xff] %v634
        %v637 = vld [vmem:[%s2] sm:$0xff]
        %v638 = vld [vmem:[#allocation2] sm:$0xff]
        %v639 = vld [vmem:[#allocation2 + $0x8] sm:$0xff]
        %v640 = vld [vmem:[#allocation2 + $0x10] sm:$0xff]
        %v641 = vld [vmem:[#allocation2 + $0x18] sm:$0xff]
        %v642 = vld [vmem:[#allocation2 + $0x20] sm:$0xff]
        %v643 = vld [vmem:[#allocation2 + $0x28] sm:$0xff]
        %v644 = vld [vmem:[#allocation2 + $0x30] sm:$0xff]
        %v645 = vld [vmem:[#allocation2 + $0x38] sm:$0xff]
        %v646 = vld [vmem:[#allocation2 + $0x40] sm:$0xff]
        %v647 = vld [vmem:[#allocation2 + $0x48] sm:$0xff]
        %v648 = vld [vmem:[#allocation2 + $0x50] sm:$0xff]
        %v649 = vld [vmem:[#allocation2 + $0x58] sm:$0xff]
        %v650 = vld [vmem:[#allocation2 + $0x60] sm:$0xff]
        %v651 = vld [vmem:[#allocation2 + $0x68] sm:$0xff]
        %v652 = vld [vmem:[#allocation2 + $0x70] sm:$0xff]
        %v653 = vld [vmem:[#allocation2 + $0x78] sm:$0xff]
        %v654 = vld [vmem:[#allocation2 + $0x80] sm:$0xff]
        %v655 = vld [vmem:[#allocation2 + $0x88] sm:$0xff]
        %v656 = vld [vmem:[%s3] sm:$0xff]
        %658 = vset.pattern.permute.xlu0 0
        %659 = vperm.xlu0 %658, %v656
        %v660 = vpop.permute.xlu0 %659
        %v663 = vunpack.c.l.b16 %v637
        %v664 = vunpack.c.h.b16 %v637
        %v665 = vpack.c.b16 %v663, %v663
        %v666 = vpack.c.b16 %v664, %v664
        %vm668 = vcmask 130048
        %v670 = vsel %vm668, %v666, 0
        %672 = vmatprep.subr.bf16.mxu0 %v639
        %673 = vmatpush1.bf16.msra.mxu0 %v638
        %674 = vmatprep.subr.bf16.mxu0 %v641
        %675 = vmatpush1.bf16.msra.mxu0 %v640
        %676 = vmatprep.subr.bf16.mxu0 %v643
        %677 = vmatpush1.bf16.msra.mxu0 %v642
        %678 = vmatprep.subr.bf16.mxu0 %v645
        %679 = vmatpush1.bf16.msra.mxu0 %v644
        %680 = vmatprep.subr.bf16.mxu0 %v647
        %681 = vmatpush1.bf16.msra.mxu0 %v646
        %682 = vmatprep.subr.bf16.mxu0 %v649
        %683 = vmatpush1.bf16.msra.mxu0 %v648
        %684 = vmatprep.subr.bf16.mxu0 %v651
        %685 = vmatpush1.bf16.msra.mxu0 %v650
        %686 = vmatprep.subr.bf16.mxu0 %v653
        %687 = vmatpush1.bf16.msra.mxu0 %v652
        %688 = vmatprep.subr.bf16.mxu0 %v655
        %689 = vmatpush1.bf16.msra.mxu0 %v654
        %690 = vmatprep.subr.bf16.mxu0 0
        %691 = vmatpush1.bf16.msra.mxu0 0
        %692 = vmatprep.subr.bf16.mxu0 0
        %693 = vmatpush1.bf16.msra.mxu0 0
        %694 = vmatprep.subr.bf16.mxu0 0
        %695 = vmatpush1.bf16.msra.mxu0 0
        %696 = vmatprep.subr.bf16.mxu0 0
        %697 = vmatpush1.bf16.msra.mxu0 0
        %698 = vmatprep.subr.bf16.mxu0 0
        %699 = vmatpush1.bf16.msra.mxu0 0
        %700 = vmatprep.subr.bf16.mxu0 0
        %701 = vmatpush1.bf16.msra.mxu0 0
        %702 = vmatprep.subr.bf16.mxu0 0
        %703 = vmatpush1.bf16.msra.mxu0 0
        %704 = vmatprep.mubr.bf16.mxu0 %v670
        %705 = vmatmul.mubr.bf16.gmra.mrb[0].mxu0 %v665
        %v706 = vpop.f32.mrb[0].mxu0
        %v707 = vadd.f32 %v660, %v706
        %v708 = vpop.f32.mrb[0].mxu0
        %v709 = vadd.f32 %v660, %v708
        %v710 = vpop.f32.mrb[0].mxu0
        %v711 = vpop.f32.mrb[0].mxu0
        %712 = vdwg.mxu0
        %v713 = vmax.f32 %v707, 0.0
        %v714 = vmax.f32 %v709, 0.0
        %715 = vst [vmem:[%s215] sm:$0xff] %v713
        %716 = vst [vmem:[%s215 + $0x8] sm:$0xff] %v714
        %s717 = sand.u32 %s118, 1
        %s718 = scalar_lea.sflag [#allocation5], %s717
        %s719 = sand.u32 %s118, 1
        %s720 = smul.addr %s719, 16
        %s721 = scalar_lea.vmem [#allocation6], %s720
        // Predicated region
        $region41: #{tpu_custom_call.1} parent=35 // pred_check
          %p722 = pneg %p128
        $region42: #{tpu_custom_call.1} parent=35 // pred_check_branch
          %724 = sbr.rel (%p722) target = $region44
        $region43: #{tpu_custom_call.1} parent=35 // pred_region
          %s726 = ssub.s32 256, 256
          %727 = vsyncadd %s718, %s726
          %s728 = smul.addr %s21, 2
          %s729 = smul.addr %s728, 128
          %s730 = scalar_lea.hbm %s4, %s729
          %s732 = sshll.u32 %s721, 4
          %s733 = int_to_ptr.vmem [resolvable:$true] %s732
          %735 = dma.vmem_to_hbm [thread:$0]  %s733, 256, %s730, %s718
        $region44: #{tpu_custom_call.1} parent=35 // pred_fallthru
          _
      $region36: #{tpu_custom_call.1} parent=5 // pred_fallthru
        _
      %p736 = scmp.le.s32.totalorder 2, %s16
      // Predicated region
      $region45: #{tpu_custom_call.1} parent=5 // pred_check
        %p737 = pneg %p736
      $region46: #{tpu_custom_call.1} parent=5 // pred_check_branch
        %739 = sbr.rel (%p737) target = $region48
      $region47: #{tpu_custom_call.1} parent=5 // pred_region
        %s740 = ssub.s32 %s16, 2
        // Predicated region
        $region49: #{tpu_custom_call.1} parent=47 // pred_check
          %p741 = pneg %p134
        $region50: #{tpu_custom_call.1} parent=47 // pred_check_branch
          %743 = sbr.rel (%p741) target = $region52
        $region51: #{tpu_custom_call.1} parent=47 // pred_region
          %s744 = sand.u32 %s119, 1
          %s745 = scalar_lea.sflag [#allocation5], %s744
          %s746 = sand.u32 %s119, 1
          %s747 = smul.addr %s746, 16
          %s748 = scalar_lea.vmem [#allocation6], %s747
          %749 = dma.done %s745, 256
        $region52: #{tpu_custom_call.1} parent=47 // pred_fallthru
          _
      $region48: #{tpu_custom_call.1} parent=5 // pred_fallthru
        _
    $region6: #{tpu_custom_call.1} parent=1 // loop_footer
      %s20 = sadd.s32 1, %s16
    $region7: #{tpu_custom_call.1} parent=1 // loop_footer_branch
      %15 = sbr.rel target = $region3
    $region8: #{tpu_custom_call.1} parent=1 // loop_exit
      _
    %750 = vsyncpa [#allocation4], 1
    %s751 = scalar_lea.sflag [#allocation4], 1
    %752 = vsyncpa %s751, 1
    %753 = vsyncpa [#allocation5], 1
    %s754 = scalar_lea.sflag [#allocation5], 1
    %755 = vsyncpa %s754, 1

</llo_original>
